<compile_context>
chip_gen: v5e
topology: v5e:2x2
jax: 0.10.0
libtpu: 0.0.40
codegen_flags: <defaults>
</compile_context>

<pallas_src>
import functools

import jax
import jax.numpy as jnp
import numpy as np
from jax import lax
from jax.experimental import pallas as pl
from jax.experimental.pallas import tpu as pltpu


def _round_up(x, m):
    return ((x + m - 1) // m) * m


def _vmem_estimate(sp, e, hp, tq, x_bufs, w_bufs):
    x_bytes = x_bufs * sp * e * 4                      # f32 input window(s)
    kv_scratch = sp * 2 * hp * 2                       # bf16 fused [K|V] scratch
    w_bytes = w_bufs * (e * 3 * hp * 2 + 3 * hp * 4)   # bf16 weights + f32 biases
    out_bytes = 2 * tq * hp * 4                        # double-buffered output tile
    tmp_bytes = 2 * tq * sp * 4                        # live f32 score/exp slabs
    return x_bytes + kv_scratch + w_bytes + out_bytes + tmp_bytes


def _select_config(s, e, hp):
    """Generation-aware query tile / buffering / vmem-limit selection."""
    try:
        vmem_cap = int(pltpu.get_tpu_info().vmem_capacity_bytes)
    except Exception:
        vmem_cap = 128 * 1024 * 1024                   # v5e/v6e physical VMEM
    budget = int(0.70 * vmem_cap)

    cands = [t for t in (256, 128) if t <= s] or [s]   # prefer MXU-filling TQ=256
    choice = None
    for tq in cands:
        sp = _round_up(s, tq)
        # Single-buffer the big, constant-index operands only when they are large
        # enough to matter (keeps the tiny-shape compile path on plain BlockSpecs).
        x_bufs = 1 if 2 * sp * e * 4 > (16 << 20) else 2
        w_bufs = 1 if (e * 3 * hp * 2 + 3 * hp * 4) > (512 << 10) else 2
        need = _vmem_estimate(sp, e, hp, tq, x_bufs, w_bufs)
        choice = (tq, sp, x_bufs, w_bufs, need)
        if need <= budget:
            break
    tq, sp, x_bufs, w_bufs, need = choice
    vmem_limit = min(int(0.90 * vmem_cap), max(32 << 20, need + (8 << 20)))
    return tq, sp, x_bufs, w_bufs, vmem_limit


def _spec(shape, index_map, buffers=2):
    if buffers == 2:
        return pl.BlockSpec(shape, index_map)
    try:
        return pl.BlockSpec(shape, index_map, pipeline_mode=pl.Buffered(buffers))
    except Exception:  # older jax without pipeline_mode / Buffered
        return pl.BlockSpec(shape, index_map)


def _attention_head_kernel(x_ref, wq_ref, wkv_ref, bq_ref, bkv_ref, o_ref,
                           kv_scr, *, tq, hp, s_valid, s_pad):
    # x_ref:   (1, Sp, E)  full (padded) sequence, fetched once per batch element
    # wq_ref:  (E, Hp)     bf16, 1/sqrt(H) pre-folded
    # wkv_ref: (E, 2*Hp)   bf16, fused [K | V] projection
    # bq_ref:  (1, Hp)     f32, 1/sqrt(H) pre-folded
    # bkv_ref: (1, 2*Hp)   f32
    # o_ref:   (1, TQ, Hp)
    # kv_scr:  (Sp, 2*Hp)  bf16 fused [K | V] scratch, resident across query tiles
    qi = pl.program_id(1)

    # K/V projection for the whole sequence, once per batch element, with a single
    # fused wide MXU pass written straight into bf16 scratch (no f32 KV slab).
    @pl.when(qi == 0)
    def _():
        xf = x_ref[0].astype(jnp.bfloat16)                                  # (Sp, E)
        kv = jnp.dot(xf, wkv_ref[...], preferred_element_type=jnp.float32)
        kv_scr[...] = (kv + bkv_ref[...]).astype(jnp.bfloat16)

    # Query tile sliced from the already-resident x window (no second HBM read).
    q_start = pl.multiple_of(qi * tq, tq)
    xq = x_ref[0, pl.ds(q_start, tq), :].astype(jnp.bfloat16)               # (TQ, E)
    q = jnp.dot(xq, wq_ref[...], preferred_element_type=jnp.float32) + bq_ref[...]

    k = kv_scr[:, :hp]                                                      # (Sp, Hp)
    v = kv_scr[:, hp:]                                                      # (Sp, Hp)

    # scores = Q @ K^T: contract head dims of both operands (no transpose).
    scores = lax.dot_general(
        q.astype(jnp.bfloat16), k,
        dimension_numbers=(((1,), (1,)), ((), ())),
        preferred_element_type=jnp.float32)                                 # (TQ, Sp)

    if s_pad != s_valid:
        # Padded key columns (from query-axis padding of the input) -> -inf.
        key_idx = lax.broadcasted_iota(jnp.int32, scores.shape, 1)
        scores = jnp.where(key_idx < s_valid, scores, -jnp.inf)

    # Numerically stable softmax with DEFERRED normalization (flash trick):
    # multiply the small (TQ, Hp) output by 1/denom instead of the (TQ, Sp) slab.
    m = jnp.max(scores, axis=-1, keepdims=True)
    e = jnp.exp(scores - m)
    denom = jnp.sum(e, axis=-1, keepdims=True)                              # (TQ, 1)

    out = jnp.dot(e.astype(jnp.bfloat16), v, preferred_element_type=jnp.float32)
    out = out * pl.reciprocal(denom, approx=True)                           # (TQ, Hp)
    o_ref[0] = out.astype(o_ref.dtype)


def attention_head(hidden_state, wq, wk, wv, bq, bk, bv):
    """hidden_state: [B, S, E]; w*: [E, H]; b*: [1, H] -> [B, S, H]."""
    B, S, E = hidden_state.shape
    H = wq.shape[1]
    Hp = _round_up(H, 128)                      # lane-dense padded head dim
    TQ, Sp, x_bufs, w_bufs, vmem_limit = _select_config(S, E, Hp)
    n_q = Sp // TQ

    scale = 1.0 / float(np.sqrt(H))             # true head_dim, matches sqrt(dim_k)

    def pad_h(a):
        return jnp.pad(a, ((0, 0), (0, Hp - H)))

    # Fold the softmax scale into the Q projection; zero-pad the head dim (padded
    # q/k/v columns are exactly zero -> scores and out[:, :H] unchanged); fuse K/V
    # weights into one (E, 2*Hp) operand; bf16 weights for the MXU.
    w_q = (pad_h(wq) * scale).astype(jnp.bfloat16)
    b_q = (pad_h(bq) * scale).astype(jnp.float32)
    w_kv = jnp.concatenate([pad_h(wk), pad_h(wv)], axis=1).astype(jnp.bfloat16)
    b_kv = jnp.concatenate([pad_h(bk), pad_h(bv)], axis=1).astype(jnp.float32)

    x = hidden_state
    if Sp != S:
        # Pad the query/sequence axis only; padded keys are masked in-kernel.
        x = jnp.pad(x, ((0, 0), (0, Sp - S), (0, 0)))

    kernel = functools.partial(_attention_head_kernel,
                               tq=TQ, hp=Hp, s_valid=S, s_pad=Sp)

    out_padded = pl.pallas_call(
        kernel,
        out_shape=jax.ShapeDtypeStruct((B, Sp, Hp), hidden_state.dtype),
        grid_spec=pltpu.PrefetchScalarGridSpec(
            num_scalar_prefetch=0,
            grid=(B, n_q),
            in_specs=[
                # Full (padded) sequence; block index depends only on b, so it is
                # fetched once per batch element and reused across query tiles.
                _spec((1, Sp, E), lambda b, qi: (b, 0, 0), buffers=x_bufs),
                _spec((E, Hp), lambda b, qi: (0, 0), buffers=w_bufs),
                _spec((E, 2 * Hp), lambda b, qi: (0, 0), buffers=w_bufs),
                _spec((1, Hp), lambda b, qi: (0, 0), buffers=w_bufs),
                _spec((1, 2 * Hp), lambda b, qi: (0, 0), buffers=w_bufs),
            ],
            out_specs=pl.BlockSpec((1, TQ, Hp), lambda b, qi: (b, qi, 0)),
            scratch_shapes=[
                # Fused [K | V] bf16 scratch, resident across query tiles.
                pltpu.VMEM((Sp, 2 * Hp), jnp.bfloat16),
            ],
        ),
        compiler_params=pltpu.CompilerParams(
            dimension_semantics=("parallel", "arbitrary"),
            vmem_limit_bytes=vmem_limit,
        ),
    )(x, w_q, w_kv, b_q, b_kv)

    # Strip query padding and lane padding back to the module's [B, S, H] contract.
    return out_padded[:, :S, :H]


def init_linear_params(key, fan_in, fan_out):
    # Deterministic init mimicking nn.Linear: U(-1/sqrt(fan_in), 1/sqrt(fan_in)).
    kw, kb = jax.random.split(key)
    bound = 1.0 / np.sqrt(fan_in)
    w = jax.random.uniform(kw, (fan_in, fan_out), jnp.float32, -bound, bound)
    b = jax.random.uniform(kb, (1, fan_out), jnp.float32, -bound, bound)
    return w, b


def reference_attention_head(x, wq, wk, wv, bq, bk, bv):
    q = x @ wq + bq
    k = x @ wk + bk
    v = x @ wv + bv
    dim_k = q.shape[-1]
    scores = jnp.einsum("bqd,bkd->bqk", q, k) / np.sqrt(dim_k)
    weights = jax.nn.softmax(scores, axis=-1)
    return jnp.einsum("bqk,bkd->bqd", weights, v)


if __name__ == "__main__":
    # Small shapes consistent with the module: batch=2, seq=8, embed_dim=32, head_dim=16.
    B, S, E, H = 2, 8, 32, 16

    key = jax.random.PRNGKey(0)
    kx, kq, kk, kv = jax.random.split(key, 4)

    hidden_state = jax.random.normal(kx, (B, S, E), jnp.float32)
    wq, bq = init_linear_params(kq, E, H)
    wk, bk = init_linear_params(kk, E, H)
    wv, bv = init_linear_params(kv, E, H)

    out = attention_head(hidden_state, wq, wk, wv, bq, bk, bv)
    out = jax.block_until_ready(out)

    ref = reference_attention_head(hidden_state, wq, wk, wv, bq, bk, bv)
    # bf16 MXU operands + approx reciprocal -> looser tolerance than a pure-f32 path.
    np.testing.assert_allclose(np.asarray(out), np.asarray(ref), rtol=5e-2, atol=5e-2)

    print("KERNEL_OK")
</pallas_src>

<mosaic_0001>
module attributes {stable_mosaic.version = 11 : i64} {
  func.func @_attention_head_kernel(%arg0: i32, %arg1: i32, %arg2: memref<1x8x32xf32, #tpu.memory_space<vmem>>, %arg3: memref<32x128xbf16, #tpu.memory_space<vmem>>, %arg4: memref<32x256xbf16, #tpu.memory_space<vmem>>, %arg5: memref<1x128xf32, #tpu.memory_space<vmem>>, %arg6: memref<1x256xf32, #tpu.memory_space<vmem>>, %arg7: memref<1x8x128xf32, #tpu.memory_space<vmem>>, %arg8: memref<8x256xbf16, #tpu.memory_space<vmem>>) attributes {dimension_semantics = [#tpu.dimension_semantics<parallel>, #tpu.dimension_semantics<arbitrary>], iteration_bounds = array<i64: 2, 1>, scalar_prefetch = 0 : i64, scratch_operands = 1 : i64, tpu.core_type = #tpu.core_type<tc>, window_params = [{transform_indices = @transform_0, window_bounds = array<i64: 1, 8, 32>}, {pipeline_mode = #tpu.pipeline_mode<synchronous>, transform_indices = @transform_1, window_bounds = array<i64: 32, 128>}, {pipeline_mode = #tpu.pipeline_mode<synchronous>, transform_indices = @transform_2, window_bounds = array<i64: 32, 256>}, {pipeline_mode = #tpu.pipeline_mode<synchronous>, transform_indices = @transform_3, window_bounds = array<i64: 1, 128>}, {pipeline_mode = #tpu.pipeline_mode<synchronous>, transform_indices = @transform_4, window_bounds = array<i64: 1, 256>}, {transform_indices = @transform_5, window_bounds = array<i64: 1, 8, 128>}]} {
    %c0_i32 = arith.constant 0 : i32
    %0 = arith.cmpi eq, %arg1, %c0_i32 : i32
    %1 = arith.extui %0 : i1 to i32
    %c0_i32_0 = arith.constant 0 : i32
    %2 = arith.cmpi ne, %1, %c0_i32_0 : i32
    scf.if %2 {
      %c0_16 = arith.constant 0 : index
      %c0_17 = arith.constant 0 : index
      %c0_18 = arith.constant 0 : index
      %33 = vector.load %arg2[%c0_16, %c0_17, %c0_18] : memref<1x8x32xf32, #tpu.memory_space<vmem>>, vector<1x8x32xf32>
      %34 = vector.shape_cast %33 : vector<1x8x32xf32> to vector<8x32xf32>
      %35 = arith.truncf %34 : vector<8x32xf32> to vector<8x32xbf16>
      %c0_19 = arith.constant 0 : index
      %c0_20 = arith.constant 0 : index
      %36 = vector.load %arg4[%c0_19, %c0_20] : memref<32x256xbf16, #tpu.memory_space<vmem>>, vector<32x256xbf16>
      %cst_21 = arith.constant dense<0.000000e+00> : vector<8x256xf32>
      %37 = tpu.matmul %35, %36, %cst_21 {dimension_numbers = #tpu.dot_dimension_numbers<[1], [0], [0], [1], [0, 0, 1, 1], [], []>} : vector<8x32xbf16>, vector<32x256xbf16>, vector<8x256xf32> -> vector<8x256xf32>
      %c0_22 = arith.constant 0 : index
      %c0_23 = arith.constant 0 : index
      %38 = vector.load %arg6[%c0_22, %c0_23] : memref<1x256xf32, #tpu.memory_space<vmem>>, vector<1x256xf32>
      %39 = vector.broadcast %38 : vector<1x256xf32> to vector<8x256xf32>
      %40 = arith.addf %37, %39 : vector<8x256xf32>
      %41 = arith.truncf %40 : vector<8x256xf32> to vector<8x256xbf16>
      %c0_24 = arith.constant 0 : index
      %c0_25 = arith.constant 0 : index
      %42 = vector.load %arg8[%c0_24, %c0_25] : memref<8x256xbf16, #tpu.memory_space<vmem>>, vector<8x256xbf16>
      tpu.vector_store %arg8[%c0_24, %c0_25], %41 {strides = array<i32>} : memref<8x256xbf16, #tpu.memory_space<vmem>>, vector<8x256xbf16>,
    } else {
    }
    %c8_i32 = arith.constant 8 : i32
    %3 = arith.muli %arg1, %c8_i32 : i32
    %4 = tpu.assume_multiple %3, 8 : i32
    %c0 = arith.constant 0 : index
    %5 = arith.index_cast %4 : i32 to index
    %c0_1 = arith.constant 0 : index
    %6 = vector.load %arg2[%c0, %5, %c0_1] : memref<1x8x32xf32, #tpu.memory_space<vmem>>, vector<1x8x32xf32>
    %7 = vector.shape_cast %6 : vector<1x8x32xf32> to vector<8x32xf32>
    %8 = arith.truncf %7 : vector<8x32xf32> to vector<8x32xbf16>
    %c0_2 = arith.constant 0 : index
    %c0_3 = arith.constant 0 : index
    %9 = vector.load %arg3[%c0_2, %c0_3] : memref<32x128xbf16, #tpu.memory_space<vmem>>, vector<32x128xbf16>
    %cst = arith.constant dense<0.000000e+00> : vector<8x128xf32>
    %10 = tpu.matmul %8, %9, %cst {dimension_numbers = #tpu.dot_dimension_numbers<[1], [0], [0], [1], [0, 0, 1, 1], [], []>} : vector<8x32xbf16>, vector<32x128xbf16>, vector<8x128xf32> -> vector<8x128xf32>
    %c0_4 = arith.constant 0 : index
    %c0_5 = arith.constant 0 : index
    %11 = vector.load %arg5[%c0_4, %c0_5] : memref<1x128xf32, #tpu.memory_space<vmem>>, vector<1x128xf32>
    %12 = vector.broadcast %11 : vector<1x128xf32> to vector<8x128xf32>
    %13 = arith.addf %10, %12 : vector<8x128xf32>
    %c0_6 = arith.constant 0 : index
    %c0_7 = arith.constant 0 : index
    %14 = vector.load %arg8[%c0_6, %c0_7] : memref<8x256xbf16, #tpu.memory_space<vmem>>, vector<8x128xbf16>
    %c0_8 = arith.constant 0 : index
    %c128 = arith.constant 128 : index
    %15 = vector.load %arg8[%c0_8, %c128] : memref<8x256xbf16, #tpu.memory_space<vmem>>, vector<8x128xbf16>
    %16 = arith.truncf %13 : vector<8x128xf32> to vector<8x128xbf16>
    %cst_9 = arith.constant dense<0.000000e+00> : vector<8x8xf32>
    %17 = tpu.matmul %16, %14, %cst_9 {dimension_numbers = #tpu.dot_dimension_numbers<[1], [1], [0], [0], [0, 0, 1, 0], [], []>} : vector<8x128xbf16>, vector<8x128xbf16>, vector<8x8xf32> -> vector<8x8xf32>
    %cst_10 = arith.constant dense<0xFF800000> : vector<8xf32>
    %18 = vector.multi_reduction <maximumf>, %17, %cst_10 [1] : vector<8x8xf32> to vector<8xf32>
    %19 = vector.shape_cast %18 : vector<8xf32> to vector<8x1xf32>
    %20 = vector.broadcast %19 : vector<8x1xf32> to vector<8x8xf32>
    %21 = arith.subf %17, %20 : vector<8x8xf32>
    %22 = math.exp %21 : vector<8x8xf32>
    %cst_11 = arith.constant dense<0.000000e+00> : vector<8xf32>
    %23 = vector.multi_reduction <add>, %22, %cst_11 [1] : vector<8x8xf32> to vector<8xf32>
    %24 = vector.shape_cast %23 : vector<8xf32> to vector<8x1xf32>
    %25 = arith.truncf %22 : vector<8x8xf32> to vector<8x8xbf16>
    %cst_12 = arith.constant dense<0.000000e+00> : vector<8x128xf32>
    %26 = tpu.matmul %25, %15, %cst_12 {dimension_numbers = #tpu.dot_dimension_numbers<[1], [0], [0], [1], [0, 0, 1, 1], [], []>} : vector<8x8xbf16>, vector<8x128xbf16>, vector<8x128xf32> -> vector<8x128xf32>
    %27 = tpu.reciprocal %24 {approx = true} : vector<8x1xf32> -> vector<8x1xf32>
    %28 = vector.broadcast %27 : vector<8x1xf32> to vector<8x128xf32>
    %29 = arith.mulf %26, %28 : vector<8x128xf32>
    %c0_13 = arith.constant 0 : index
    %c0_14 = arith.constant 0 : index
    %c0_15 = arith.constant 0 : index
    %30 = vector.load %arg7[%c0_13, %c0_14, %c0_15] : memref<1x8x128xf32, #tpu.memory_space<vmem>>, vector<1x8x128xf32>
    %31 = vector.shape_cast %30 : vector<1x8x128xf32> to vector<8x128xf32>
    %32 = vector.shape_cast %29 : vector<8x128xf32> to vector<1x8x128xf32>
    tpu.vector_store %arg7[%c0_13, %c0_14, %c0_15], %32 {strides = array<i32>} : memref<1x8x128xf32, #tpu.memory_space<vmem>>, vector<1x8x128xf32>,
    return
  }
  func.func @transform_0(%arg0: i32, %arg1: i32) -> (i32, i32, i32) {
    %c0_i32 = arith.constant 0 : i32
    %c0_i32_0 = arith.constant 0 : i32
    %c0_i32_1 = arith.constant 0 : i32
    return %arg0, %c0_i32, %c0_i32_0 : i32, i32, i32
  }
  func.func @transform_1(%arg0: i32, %arg1: i32) -> (i32, i32) {
    %c0_i32 = arith.constant 0 : i32
    %c0_i32_0 = arith.constant 0 : i32
    %c0_i32_1 = arith.constant 0 : i32
    return %c0_i32, %c0_i32_0 : i32, i32
  }
  func.func @transform_2(%arg0: i32, %arg1: i32) -> (i32, i32) {
    %c0_i32 = arith.constant 0 : i32
    %c0_i32_0 = arith.constant 0 : i32
    %c0_i32_1 = arith.constant 0 : i32
    return %c0_i32, %c0_i32_0 : i32, i32
  }
  func.func @transform_3(%arg0: i32, %arg1: i32) -> (i32, i32) {
    %c0_i32 = arith.constant 0 : i32
    %c0_i32_0 = arith.constant 0 : i32
    %c0_i32_1 = arith.constant 0 : i32
    return %c0_i32, %c0_i32_0 : i32, i32
  }
  func.func @transform_4(%arg0: i32, %arg1: i32) -> (i32, i32) {
    %c0_i32 = arith.constant 0 : i32
    %c0_i32_0 = arith.constant 0 : i32
    %c0_i32_1 = arith.constant 0 : i32
    return %c0_i32, %c0_i32_0 : i32, i32
  }
  func.func @transform_5(%arg0: i32, %arg1: i32) -> (i32, i32, i32) {
    %c0_i32 = arith.constant 0 : i32
    %c0_i32_0 = arith.constant 0 : i32
    return %arg0, %arg1, %c0_i32 : i32, i32, i32
  }
}

</mosaic_0001>

<llo_original>
// kernel: tpu_custom_call.1
$region0: #{tpu_custom_call.1}
  #allocation0 [shape = 'u32[]', space=smem, size = 0x4, offset = 0x4, fixed_abs, tag = 'smem constant byte address 0x4 - core index']
  #allocation1 [shape = 'u32[72,128]{1,0:T(1,128)}', space=vmem, size = 0x9000, scoped, tag = 'internal scratch']
  #allocation2 [shape = 'bf16[8,256]{1,0:T(8,128)(2,1)}', space=vmem, size = 0x1000, scoped, tag = 'scratch operand']
  %s0 = inlined_call_operand.hbm [shape: f32[2,8,32], index: 0, kind: input, shape index: {}]
  %s1 = inlined_call_operand.hbm [shape: bf16[32,128], index: 1, kind: input, shape index: {}]
  %s2 = inlined_call_operand.hbm [shape: bf16[32,256], index: 2, kind: input, shape index: {}]
  %s3 = inlined_call_operand.vmem [shape: f32[1,128], index: 3, kind: input, shape index: {}]
  %s4 = inlined_call_operand.vmem [shape: f32[1,256], index: 4, kind: input, shape index: {}]
  %s5 = inlined_call_operand.hbm [shape: f32[2,8,128], index: 5, kind: output, shape index: {}]
  %s6 = sld [smem:[#allocation0]]
  $region69: #{tpu_custom_call.1} parent=0
    _
  %s8 = ssub.s32 1, %s6
  %s9 = scalar_select 0, %s8, %s6
  $region1: #{tpu_custom_call.1} parent=0
    #allocation3 [shape = 'u8[8192]{0}', space=vmem, size = 0x2000, scoped, tag = 'input window, operand 0']
    #allocation4 [shape = 's32[2]{0}', space=sflag, size = 0x8, scoped, tag = 'scoped memory for tpu_custom_call.1']
    #allocation5 [shape = 's32[2]{0}', space=sflag, size = 0x8, scoped, tag = 'scoped memory for tpu_custom_call.1']
    #allocation6 [shape = 'u8[8192]{0}', space=vmem, size = 0x2000, scoped, tag = 'input window, operand 1, single buffered']
    #allocation7 [shape = 's32[1]{0}', space=sflag, size = 0x4, scoped, tag = 'scoped memory for tpu_custom_call.1']
    #allocation8 [shape = 'u8[16384]{0}', space=vmem, size = 0x4000, scoped, tag = 'input window, operand 2, single buffered']
    #allocation9 [shape = 'u8[8192]{0}', space=vmem, size = 0x2000, scoped, tag = 'output window, operand 0']
    %10 = vsyncpa [#allocation4], 0
    %s11 = scalar_lea.sflag [#allocation4], 1
    %12 = vsyncpa %s11, 0
    %13 = vsyncpa [#allocation7], 0
    %14 = vsyncpa [#allocation5], 0
    %s15 = scalar_lea.sflag [#allocation5], 1
    %16 = vsyncpa %s15, 0
    loop: start=0, step=1, limit=4
    $region2: #{tpu_custom_call.1} parent=1 // loop_pre_header
      _
    $region3: #{tpu_custom_call.1} parent=1 // loop_header
      %s18 = sphi 0, %s22
      %p19 = scmp.ge.s32.totalorder %s18, 4
      %s25 = sphi 0, %s37
      %s26 = sphi 0, %s33
      %s27 = sphi 0, %s25
      %s28 = sphi 0, %s26
      %s29 = sphi 0, %s27
      %s30 = sphi 0, %s28
      %s40 = sphi 0, %s42
      %s43 = sphi 0, %s40
      %s44 = sphi 0, %s43
      %s60 = sphi 0, %s44
      %s64 = sphi 0, %s64
      %s66 = sphi 0, %s64
      %s67 = sphi 0, %s66
      %s81 = sphi 0, %s67
      %s85 = sphi 0, %s85
      %s87 = sphi 0, %s85
      %s88 = sphi 0, %s87
      %s102 = sphi 0, %s88
      %s106 = sphi 0, %s106
      %s108 = sphi 0, %s106
      %s109 = sphi 0, %s108
      %s123 = sphi 0, %s109
      %s127 = sphi 0, %s127
      %s129 = sphi 0, %s127
      %s130 = sphi 0, %s129
      %s144 = sphi 0, %s130
      %s152 = sphi 0, %s154
      %s155 = sphi 0, %s152
      %s156 = sphi 0, %s155
      %s172 = sphi 0, %s156
    $region4: #{tpu_custom_call.1} parent=1 // loop_header_branch
      %21 = sbr.rel (%p19) target = $region8
    $region5: #{tpu_custom_call.1} parent=1 // loop_body
      %s23 = ssub.s32 %s18, 1
      %s24 = ssub.s32 %s18, 2
      %s31 = sadd.s32 1, %s26
      %p32 = scmp.ge.s32.totalorder %s31, 1
      %s33 = scalar_select %p32, 0, %s31
      %s34 = sadd.s32 1, %s25
      %s35 = scalar_select %p32, %s34, %s25
      %p36 = scmp.ge.s32.totalorder %s35, 2
      %s37 = scalar_select %p36, 0, %s35
      %s38 = ssub.s32 %s25, %s37
      %p39 = scmp.eq.s32.totalorder %s38, 0
      %s41 = sadd.s32 %s40, 1
      %s42 = scalar_select %p39, %s40, %s41
      %p45 = pneg %p39
      %p46 = scmp.eq.s32.totalorder %s18, 1
      %p47 = por %p45, %p46
      %p48 = scmp.ne.s32.totalorder %s40, %s43
      %p49 = scmp.eq.s32.totalorder %s18, 0
      %p50 = por %p48, %p49
      %p51 = scmp.ne.s32.totalorder %s40, %s43
      %p52 = scmp.eq.s32.totalorder %s23, 1
      %p53 = por %p51, %p52
      %p54 = scmp.ne.s32.totalorder %s43, %s44
      %p55 = scmp.eq.s32.totalorder %s23, 0
      %p56 = por %p54, %p55
      %p57 = scmp.ne.s32.totalorder %s43, %s44
      %p58 = scmp.eq.s32.totalorder %s24, 1
      %p59 = por %p57, %p58
      %p61 = scmp.ne.s32.totalorder %s44, %s60
      %p62 = scmp.eq.s32.totalorder %s24, 0
      %p63 = por %p61, %p62
      %s65 = sadd.s32 %s64, 1
      %p68 = scmp.eq.s32.totalorder %s18, 1
      %p69 = scmp.ne.s32.totalorder %s64, %s66
      %p70 = scmp.eq.s32.totalorder %s18, 0
      %p71 = por %p69, %p70
      %p72 = scmp.ne.s32.totalorder %s64, %s66
      %p73 = scmp.eq.s32.totalorder %s23, 1
      %p74 = por %p72, %p73
      %p75 = scmp.ne.s32.totalorder %s66, %s67
      %p76 = scmp.eq.s32.totalorder %s23, 0
      %p77 = por %p75, %p76
      %p78 = scmp.ne.s32.totalorder %s66, %s67
      %p79 = scmp.eq.s32.totalorder %s24, 1
      %p80 = por %p78, %p79
      %p82 = scmp.ne.s32.totalorder %s67, %s81
      %p83 = scmp.eq.s32.totalorder %s24, 0
      %p84 = por %p82, %p83
      %s86 = sadd.s32 %s85, 1
      %p89 = scmp.eq.s32.totalorder %s18, 1
      %p90 = scmp.ne.s32.totalorder %s85, %s87
      %p91 = scmp.eq.s32.totalorder %s18, 0
      %p92 = por %p90, %p91
      %p93 = scmp.ne.s32.totalorder %s85, %s87
      %p94 = scmp.eq.s32.totalorder %s23, 1
      %p95 = por %p93, %p94
      %p96 = scmp.ne.s32.totalorder %s87, %s88
      %p97 = scmp.eq.s32.totalorder %s23, 0
      %p98 = por %p96, %p97
      %p99 = scmp.ne.s32.totalorder %s87, %s88
      %p100 = scmp.eq.s32.totalorder %s24, 1
      %p101 = por %p99, %p100
      %p103 = scmp.ne.s32.totalorder %s88, %s102
      %p104 = scmp.eq.s32.totalorder %s24, 0
      %p105 = por %p103, %p104
      %s107 = sadd.s32 %s106, 1
      %p110 = scmp.eq.s32.totalorder %s18, 1
      %p111 = scmp.ne.s32.totalorder %s106, %s108
      %p112 = scmp.eq.s32.totalorder %s18, 0
      %p113 = por %p111, %p112
      %p114 = scmp.ne.s32.totalorder %s106, %s108
      %p115 = scmp.eq.s32.totalorder %s23, 1
      %p116 = por %p114, %p115
      %p117 = scmp.ne.s32.totalorder %s108, %s109
      %p118 = scmp.eq.s32.totalorder %s23, 0
      %p119 = por %p117, %p118
      %p120 = scmp.ne.s32.totalorder %s108, %s109
      %p121 = scmp.eq.s32.totalorder %s24, 1
      %p122 = por %p120, %p121
      %p124 = scmp.ne.s32.totalorder %s109, %s123
      %p125 = scmp.eq.s32.totalorder %s24, 0
      %p126 = por %p124, %p125
      %s128 = sadd.s32 %s127, 1
      %p131 = scmp.eq.s32.totalorder %s18, 1
      %p132 = scmp.ne.s32.totalorder %s127, %s129
      %p133 = scmp.eq.s32.totalorder %s18, 0
      %p134 = por %p132, %p133
      %p135 = scmp.ne.s32.totalorder %s127, %s129
      %p136 = scmp.eq.s32.totalorder %s23, 1
      %p137 = por %p135, %p136
      %p138 = scmp.ne.s32.totalorder %s129, %s130
      %p139 = scmp.eq.s32.totalorder %s23, 0
      %p140 = por %p138, %p139
      %p141 = scmp.ne.s32.totalorder %s129, %s130
      %p142 = scmp.eq.s32.totalorder %s24, 1
      %p143 = por %p141, %p142
      %p145 = scmp.ne.s32.totalorder %s130, %s144
      %p146 = scmp.eq.s32.totalorder %s24, 0
      %p147 = por %p145, %p146
      %s148 = ssub.s32 %s25, %s37
      %s149 = ssub.s32 %s26, %s33
      %s150 = sor.u32 %s148, %s149
      %p151 = scmp.eq.s32.totalorder %s150, 0
      %s153 = sadd.s32 %s152, 1
      %s154 = scalar_select %p151, %s152, %s153
      %p157 = pneg %p151
      %p158 = scmp.eq.s32.totalorder %s18, 1
      %p159 = por %p157, %p158
      %p160 = scmp.ne.s32.totalorder %s152, %s155
      %p161 = scmp.eq.s32.totalorder %s18, 0
      %p162 = por %p160, %p161
      %p163 = scmp.ne.s32.totalorder %s152, %s155
      %p164 = scmp.eq.s32.totalorder %s23, 1
      %p165 = por %p163, %p164
      %p166 = scmp.ne.s32.totalorder %s155, %s156
      %p167 = scmp.eq.s32.totalorder %s23, 0
      %p168 = por %p166, %p167
      %p169 = scmp.ne.s32.totalorder %s155, %s156
      %p170 = scmp.eq.s32.totalorder %s24, 1
      %p171 = por %p169, %p170
      %p173 = scmp.ne.s32.totalorder %s156, %s172
      %p174 = scmp.eq.s32.totalorder %s24, 0
      %p175 = por %p173, %p174
      %p176 = scmp.le.s32.totalorder 1, %s18
      %p177 = scmp.lt.s32.totalorder %s18, 3
      %p178 = pnand %p176, %p177
      %p179 = pneg %p178
      // Predicated region
      $region9: #{tpu_custom_call.1} parent=5 // pred_check
        _
      $region10: #{tpu_custom_call.1} parent=5 // pred_check_branch
        %181 = sbr.rel (%p178) target = $region12
      $region11: #{tpu_custom_call.1} parent=5 // pred_region
        %s182 = ssub.s32 %s18, 1
        // Predicated region
        $region13: #{tpu_custom_call.1} parent=11 // pred_check
          %p183 = pneg %p77
        $region14: #{tpu_custom_call.1} parent=11 // pred_check_branch
          %185 = sbr.rel (%p183) target = $region16
        $region15: #{tpu_custom_call.1} parent=11 // pred_region
          %187 = vsyncadd [#allocation7], 0
          %s188 = sshll.u32 %s1, 4
          %s189 = int_to_ptr.hbm [resolvable:$true] %s188
          %s190 = sshll.u32 [#allocation6], 4
          %s191 = int_to_ptr.vmem [resolvable:$true] %s190
          %196 = dma.hbm_to_vmem [thread:$0]  %s189, 256, %s191, [#allocation7], 64, 64, 4
        $region16: #{tpu_custom_call.1} parent=11 // pred_fallthru
          _
        // Predicated region
        $region17: #{tpu_custom_call.1} parent=11 // pred_check
          %p197 = pneg %p98
        $region18: #{tpu_custom_call.1} parent=11 // pred_check_branch
          %199 = sbr.rel (%p197) target = $region20
        $region19: #{tpu_custom_call.1} parent=11 // pred_region
          %201 = vsyncadd [#allocation7], 0
          %s202 = sshll.u32 %s2, 4
          %s203 = int_to_ptr.hbm [resolvable:$true] %s202
          %s204 = sshll.u32 [#allocation8], 4
          %s205 = int_to_ptr.vmem [resolvable:$true] %s204
          %210 = dma.hbm_to_vmem [thread:$0]  %s203, 512, %s205, [#allocation7], 128, 128, 8
        $region20: #{tpu_custom_call.1} parent=11 // pred_fallthru
          _
        // Predicated region
        $region21: #{tpu_custom_call.1} parent=11 // pred_check
          %p211 = pneg %p119
        $region22: #{tpu_custom_call.1} parent=11 // pred_check_branch
          %213 = sbr.rel (%p211) target = $region24
        $region23: #{tpu_custom_call.1} parent=11 // pred_region
          _
        $region24: #{tpu_custom_call.1} parent=11 // pred_fallthru
          _
        // Predicated region
        $region25: #{tpu_custom_call.1} parent=11 // pred_check
          %p214 = pneg %p140
        $region26: #{tpu_custom_call.1} parent=11 // pred_check_branch
          %216 = sbr.rel (%p214) target = $region28
        $region27: #{tpu_custom_call.1} parent=11 // pred_region
          _
        $region28: #{tpu_custom_call.1} parent=11 // pred_fallthru
          _
      $region12: #{tpu_custom_call.1} parent=5 // pred_fallthru
        _
      %p217 = scmp.lt.s32.totalorder %s18, 2
      // Predicated region
      $region29: #{tpu_custom_call.1} parent=5 // pred_check
        %p218 = pneg %p217
      $region30: #{tpu_custom_call.1} parent=5 // pred_check_branch
        %220 = sbr.rel (%p218) target = $region32
      $region31: #{tpu_custom_call.1} parent=5 // pred_region
        // Predicated region
        $region33: #{tpu_custom_call.1} parent=31 // pred_check
          %p221 = pneg %p50
        $region34: #{tpu_custom_call.1} parent=31 // pred_check_branch
          %223 = sbr.rel (%p221) target = $region36
        $region35: #{tpu_custom_call.1} parent=31 // pred_region
          %s224 = sand.u32 %s40, 1
          %s225 = scalar_lea.sflag [#allocation4], %s224
          %s226 = sand.u32 %s40, 1
          %s227 = smul.addr %s226, 8
          %s228 = scalar_lea.vmem [#allocation3], %s227
          %230 = vsyncadd %s225, 0
          %s231 = smul.addr %s25, 8
          %s232 = scalar_lea.hbm %s0, %s231
          %s234 = sshll.u32 %s232, 4
          %s235 = int_to_ptr.hbm [resolvable:$true] %s234
          %s236 = sshll.u32 %s228, 4
          %s237 = int_to_ptr.vmem [resolvable:$true] %s236
          %239 = dma.hbm_to_vmem [thread:$0]  %s235, 128, %s237, %s225
        $region36: #{tpu_custom_call.1} parent=31 // pred_fallthru
          _
      $region32: #{tpu_custom_call.1} parent=5 // pred_fallthru
        _
      %p240 = scmp.le.s32.totalorder 1, %s18
      %p241 = scmp.lt.s32.totalorder %s18, 3
      %p242 = pnand %p240, %p241
      %p243 = pneg %p242
      // Predicated region
      $region37: #{tpu_custom_call.1} parent=5 // pred_check
        _
      $region38: #{tpu_custom_call.1} parent=5 // pred_check_branch
        %245 = sbr.rel (%p242) target = $region40
      $region39: #{tpu_custom_call.1} parent=5 // pred_region
        %s246 = ssub.s32 %s18, 1
        %s247 = sand.u32 %s43, 1
        %s248 = scalar_lea.sflag [#allocation4], %s247
        %s249 = sand.u32 %s43, 1
        %s250 = smul.addr %s249, 8
        %s251 = scalar_lea.vmem [#allocation3], %s250
        // Predicated region
        $region41: #{tpu_custom_call.1} parent=39 // pred_check
          %p252 = pneg %p56
        $region42: #{tpu_custom_call.1} parent=39 // pred_check_branch
          %254 = sbr.rel (%p252) target = $region44
        $region43: #{tpu_custom_call.1} parent=39 // pred_region
          %256 = dma.done %s248, 128
        $region44: #{tpu_custom_call.1} parent=39 // pred_fallthru
          _
        // Predicated region
        $region45: #{tpu_custom_call.1} parent=39 // pred_check
          %p257 = pneg %p77
        $region46: #{tpu_custom_call.1} parent=39 // pred_check_branch
          %259 = sbr.rel (%p257) target = $region48
        $region47: #{tpu_custom_call.1} parent=39 // pred_region
          %261 = dma.done [#allocation7], 256
        $region48: #{tpu_custom_call.1} parent=39 // pred_fallthru
          _
        // Predicated region
        $region49: #{tpu_custom_call.1} parent=39 // pred_check
          %p262 = pneg %p98
        $region50: #{tpu_custom_call.1} parent=39 // pred_check_branch
          %264 = sbr.rel (%p262) target = $region52
        $region51: #{tpu_custom_call.1} parent=39 // pred_region
          %266 = dma.done [#allocation7], 512
        $region52: #{tpu_custom_call.1} parent=39 // pred_fallthru
          _
        %s267 = sand.u32 %s43, 1
        %s268 = scalar_lea.sflag [#allocation4], %s267
        %s269 = sand.u32 %s43, 1
        %s270 = smul.addr %s269, 8
        %s271 = scalar_lea.vmem [#allocation3], %s270
        %p272 = pneg %p56
        %p273 = pneg %p53
        %p274 = pneg %p77
        %p275 = pneg %p74
        %p276 = pneg %p98
        %p277 = pneg %p95
        %p278 = pneg %p119
        %p279 = pneg %p116
        %p280 = pneg %p140
        %p281 = pneg %p137
        %p282 = pneg %p168
        %p283 = pneg %p165
        %s284 = sand.u32 %s155, 1
        %s285 = scalar_lea.sflag [#allocation5], %s284
        %s286 = sand.u32 %s155, 1
        %s287 = smul.addr %s286, 8
        %s288 = scalar_lea.vmem [#allocation9], %s287
        %p290 = scmp.eq.s32.totalorder %s28, 0
        // Predicated region
        $region53: #{tpu_custom_call.1} parent=39 // pred_check
          %p291 = pneg %p290
        $region54: #{tpu_custom_call.1} parent=39 // pred_check_branch
          %293 = sbr.rel (%p291) target = $region56
        $region55: #{tpu_custom_call.1} parent=39 // pred_region
          %v294 = vld [vmem:[%s251] sm:$0xff]
          %v295 = vpack.c.bf16 %v294, %v294
          %v296 = vld [vmem:[#allocation8] sm:$0xff]
          %v297 = vld [vmem:[#allocation8 + $0x8] sm:$0xff]
          %v298 = vld [vmem:[#allocation8 + $0x10] sm:$0xff]
          %v299 = vld [vmem:[#allocation8 + $0x18] sm:$0xff]
          %v300 = vld [vmem:[%s4] sm:$0x3]
          %v302 = vperm.slane %v300, 0
          %v303 = vperm.slane %v300, 1
          %v310 = vunpack.c.l.b16 %v296
          %v311 = vunpack.c.h.b16 %v296
          %v312 = vunpack.c.l.b16 %v297
          %v313 = vunpack.c.h.b16 %v297
          %v314 = vunpack.c.l.b16 %v298
          %v315 = vunpack.c.h.b16 %v298
          %v316 = vunpack.c.l.b16 %v299
          %v317 = vunpack.c.h.b16 %v299
          %v318 = vpack.c.b16 %v312, %v310
          %v319 = vpack.c.b16 %v313, %v311
          %v320 = vpack.c.b16 %v316, %v314
          %v321 = vpack.c.b16 %v317, %v315
          %vm326 = vcmask 261120
          %v328 = vsel %vm326, %v295, 0
          %330 = vmatpush.bf16.msra.mxu0 0
          %331 = vmatpush.bf16.msra.mxu0 0
          %332 = vmatpush.bf16.msra.mxu0 0
          %333 = vmatpush.bf16.msra.mxu0 0
          %334 = vmatpush.bf16.msra.mxu0 0
          %335 = vmatpush.bf16.msra.mxu0 0
          %336 = vmatpush.bf16.msra.mxu0 %v320
          %337 = vmatpush.bf16.msra.mxu0 %v318
          %338 = vmatmul.bf16.gmra.mxu0 %v328
          %v339 = vpop.f32.mrf.mxu0
          %v340 = vadd.f32 %v302, %v339
          %v341 = vpop.f32.mrf.mxu0
          %342 = vdwg.mxu0
          %343 = vmatpush.bf16.msra.mxu0 0
          %344 = vmatpush.bf16.msra.mxu0 0
          %345 = vmatpush.bf16.msra.mxu0 0
          %346 = vmatpush.bf16.msra.mxu0 0
          %347 = vmatpush.bf16.msra.mxu0 0
          %348 = vmatpush.bf16.msra.mxu0 0
          %349 = vmatpush.bf16.msra.mxu0 %v321
          %350 = vmatpush.bf16.msra.mxu0 %v319
          %351 = vmatmul.bf16.gmra.mxu0 %v328
          %v352 = vpop.f32.mrf.mxu0
          %v353 = vadd.f32 %v303, %v352
          %v354 = vpop.f32.mrf.mxu0
          %355 = vdwg.mxu0
          %v356 = vpack.c.bf16 %v353, %v340
          %357 = vst [vmem:[#allocation2] sm:$0xff] %v356
        $region56: #{tpu_custom_call.1} parent=39 // pred_fallthru
          _
        %s358 = smul.u32 %s28, 8
        %s359 = scalar_lea.vmem %s251, %s358 [#allocation3]
        %v360 = vld [vmem:[%s359] sm:$0xff]
        %v361 = vpack.c.bf16 %v360, %v360
        %v362 = vld [vmem:[#allocation6] sm:$0xf]
        %v363 = vld [vmem:[#allocation6 + $0x4] sm:$0xf]
        %v364 = vld [vmem:[#allocation6 + $0x8] sm:$0xf]
        %v365 = vld [vmem:[#allocation6 + $0xc] sm:$0xf]
        %v366 = vld [vmem:[%s3] sm:$0x1]
        %v368 = vperm.slane %v366, 0
        %v374 = vunpack.c.l.b16 %v362
        %v375 = vunpack.c.l.b16 %v363
        %v376 = vunpack.c.l.b16 %v364
        %v377 = vunpack.c.l.b16 %v365
        %v378 = vpack.c.b16 %v375, %v374
        %v379 = vpack.c.b16 %v377, %v376
        %vm382 = vcmask 261120
        %v384 = vsel %vm382, %v361, 0
        %386 = vmatpush.bf16.msra.mxu0 0
        %387 = vmatpush.bf16.msra.mxu0 0
        %388 = vmatpush.bf16.msra.mxu0 0
        %389 = vmatpush.bf16.msra.mxu0 0
        %390 = vmatpush.bf16.msra.mxu0 0
        %391 = vmatpush.bf16.msra.mxu0 0
        %392 = vmatpush.bf16.msra.mxu0 %v379
        %393 = vmatpush.bf16.msra.mxu0 %v378
        %394 = vmatmul.bf16.gmra.mxu0 %v384
        %v395 = vpop.f32.mrf.mxu0
        %v396 = vadd.f32 %v368, %v395
        %v397 = vpop.f32.mrf.mxu0
        %398 = vdwg.mxu0
        %v399 = vld [vmem:[#allocation2] sm:$0xf]
        %v400 = vld [vmem:[#allocation2 + $0x4] sm:$0xf]
        %v401 = vpack.c.bf16 %v396, %v396
        %402 = vmatpush.bf16.xpose.msra.mxu0 0
        %403 = vmatpush.bf16.xpose.msra.mxu0 0
        %404 = vmatpush.bf16.xpose.msra.mxu0 0
        %405 = vmatpush.bf16.xpose.msra.mxu0 0
        %406 = vmatpush.bf16.xpose.msra.mxu0 0
        %407 = vmatpush.bf16.xpose.msra.mxu0 0
        %408 = vmatpush.bf16.xpose.msra.mxu0 0
        %409 = vmatpush.bf16.xpose.msra.mxu0 %v399
        %410 = vmatmul.bf16.gmra.mxu0 %v401
        %v411 = vpop.f32.mrf.mxu0
        %v412 = vadd.f32 0.0, %v411
        %v413 = vpop.f32.mrf.mxu0
        %414 = vdwg.mxu0
        %vm415 = vcmask 64512
        %v416 = vsel %vm415, %v412, -inf
        %417 = vmax.xlane.f32.xlu0 %v416
        %v418 = vpop.xlane.xlu0 %417
        %v419 = vsub.f32 %v412, %v418
        %v420 = vmul.f32 %v419, 1.442695
        %v421 = vpow.pop %v420
        %v422 = vsel %vm415, %v421, 0.0
        %423 = vadd.xlane.f32.xlu0 %v422
        %v424 = vpop.xlane.xlu0 %423
        %v425 = vpack.c.bf16 %v421, %v421
        %v427 = vsel %vm415, %v425, 0
        %vm429 = vcmask 1043456
        %v431 = vsel %vm429, %v400, 0
        %433 = vmatpush.bf16.msra.mxu0 0
        %434 = vmatpush.bf16.msra.mxu0 0
        %435 = vmatpush.bf16.msra.mxu0 0
        %436 = vmatpush.bf16.msra.mxu0 0
        %437 = vmatpush.bf16.msra.mxu0 0
        %438 = vmatpush.bf16.msra.mxu0 0
        %439 = vmatpush.bf16.msra.mxu0 0
        %440 = vmatpush.bf16.msra.mxu0 %v431
        %441 = vmatmul.bf16.gmra.mxu0 %v427
        %v442 = vpop.f32.mrf.mxu0
        %v443 = vadd.f32 0.0, %v442
        %v444 = vpop.f32.mrf.mxu0
        %445 = vdwg.mxu0
        %v446 = vrcp.pop %v424
        %v447 = vmul.f32 %v443, %v446
        %448 = vst [vmem:[%s288] sm:$0xff] %v447
        %s449 = sand.u32 %s155, 1
        %s450 = scalar_lea.sflag [#allocation5], %s449
        %s451 = sand.u32 %s155, 1
        %s452 = smul.addr %s451, 8
        %s453 = scalar_lea.vmem [#allocation9], %s452
        // Predicated region
        $region57: #{tpu_custom_call.1} parent=39 // pred_check
          %p454 = pneg %p165
        $region58: #{tpu_custom_call.1} parent=39 // pred_check_branch
          %456 = sbr.rel (%p454) target = $region60
        $region59: #{tpu_custom_call.1} parent=39 // pred_region
          %458 = vsyncadd %s450, 0
          %s459 = sadd.s32 %s28, %s27
          %s460 = smul.addr %s459, 8
          %s461 = scalar_lea.hbm %s5, %s460
          %s463 = sshll.u32 %s453, 4
          %s464 = int_to_ptr.vmem [resolvable:$true] %s463
          %s465 = sshll.u32 %s461, 4
          %s466 = int_to_ptr.hbm [resolvable:$true] %s465
          %468 = dma.vmem_to_hbm [thread:$0]  %s464, 128, %s466, %s450
        $region60: #{tpu_custom_call.1} parent=39 // pred_fallthru
          _
      $region40: #{tpu_custom_call.1} parent=5 // pred_fallthru
        _
      %p469 = scmp.le.s32.totalorder 2, %s18
      // Predicated region
      $region61: #{tpu_custom_call.1} parent=5 // pred_check
        %p470 = pneg %p469
      $region62: #{tpu_custom_call.1} parent=5 // pred_check_branch
        %472 = sbr.rel (%p470) target = $region64
      $region63: #{tpu_custom_call.1} parent=5 // pred_region
        %s473 = ssub.s32 %s18, 2
        // Predicated region
        $region65: #{tpu_custom_call.1} parent=63 // pred_check
          %p474 = pneg %p171
        $region66: #{tpu_custom_call.1} parent=63 // pred_check_branch
          %476 = sbr.rel (%p474) target = $region68
        $region67: #{tpu_custom_call.1} parent=63 // pred_region
          %s477 = sand.u32 %s156, 1
          %s478 = scalar_lea.sflag [#allocation5], %s477
          %s479 = sand.u32 %s156, 1
          %s480 = smul.addr %s479, 8
          %s481 = scalar_lea.vmem [#allocation9], %s480
          %483 = dma.done %s478, 128
        $region68: #{tpu_custom_call.1} parent=63 // pred_fallthru
          _
      $region64: #{tpu_custom_call.1} parent=5 // pred_fallthru
        _
    $region6: #{tpu_custom_call.1} parent=1 // loop_footer
      %s22 = sadd.s32 1, %s18
    $region7: #{tpu_custom_call.1} parent=1 // loop_footer_branch
      %17 = sbr.rel target = $region3
    $region8: #{tpu_custom_call.1} parent=1 // loop_exit
      _
    %484 = vsyncpa [#allocation4], 1
    %s485 = scalar_lea.sflag [#allocation4], 1
    %486 = vsyncpa %s485, 1
    %487 = vsyncpa [#allocation7], 1
    %488 = vsyncpa [#allocation5], 1
    %s489 = scalar_lea.sflag [#allocation5], 1
    %490 = vsyncpa %s489, 1

</llo_original>
